<compile_context>
chip_gen: v7x
topology: tpu7x:2x2x1
jax: 0.10.0
libtpu: 0.0.40
codegen_flags: <defaults>
</compile_context>

<pallas_src>
from functools import partial

import jax
import jax.numpy as jnp
from jax.experimental import pallas as pl
from jax.experimental.pallas import tpu as pltpu


# ---------------------------------------------------------------------------
# Kernels
# ---------------------------------------------------------------------------
def _in_kernel(x_ref, g_ref, b_ref, o_ref, *, eps):
    """InstanceNorm2d(affine=True) on one (1, c_blk, HW) tile."""
    xf = x_ref[...].astype(jnp.float32)                      # (1, cb, HW)
    inv_n = 1.0 / xf.shape[-1]
    mu = jnp.sum(xf, axis=-1, keepdims=True) * inv_n          # (1, cb, 1)
    ex2 = jnp.sum(xf * xf, axis=-1, keepdims=True) * inv_n    # E[x^2]
    var = jnp.maximum(ex2 - mu * mu, 0.0)
    rstd = jax.lax.rsqrt(var + eps)
    a = g_ref[...].astype(jnp.float32) * rstd                 # folded affine
    b = b_ref[...].astype(jnp.float32) - mu * a
    o_ref[...] = (xf * a + b).astype(o_ref.dtype)


def _bn_stats_kernel(x_ref, g_ref, beta_ref, a_ref, b_ref, sum_sc, ssq_sc,
                     *, count, eps):
    """Per-channel sum/sumsq reduction over the N grid axis; finalize to a, b."""
    n = pl.program_id(1)

    @pl.when(n == 0)
    def _():
        sum_sc[...] = jnp.zeros_like(sum_sc)
        ssq_sc[...] = jnp.zeros_like(ssq_sc)

    xf = x_ref[...].astype(jnp.float32)                       # (1, cb, HW)
    sum_sc[...] += jnp.sum(xf, axis=-1, keepdims=True)
    ssq_sc[...] += jnp.sum(xf * xf, axis=-1, keepdims=True)

    @pl.when(n == pl.num_programs(1) - 1)
    def _():
        inv = 1.0 / count
        mu = sum_sc[...] * inv
        var = jnp.maximum(ssq_sc[...] * inv - mu * mu, 0.0)
        rstd = jax.lax.rsqrt(var + eps)
        a = g_ref[...].astype(jnp.float32) * rstd
        a_ref[...] = a
        b_ref[...] = beta_ref[...].astype(jnp.float32) - mu * a


def _bn_norm_kernel(x_ref, a_ref, b_ref, o_ref):
    """Streaming y = x * a + b (1R + 1W per element)."""
    o_ref[...] = (x_ref[...].astype(jnp.float32) * a_ref[...]
                  + b_ref[...]).astype(o_ref.dtype)


# ---------------------------------------------------------------------------
# Wrapper
# ---------------------------------------------------------------------------
def _channel_block(c: int, hw: int, bytes_per_elem: int,
                   budget: int = 2 * 1024 * 1024) -> int:
    """Pick a sublane-friendly channel block (multiple of 8, or the full dim)."""
    if c <= 8:
        return c
    for cand in (32, 16, 8):
        if cand <= c and cand * hw * bytes_per_elem <= budget:
            return cand
    return 8
    # TODO(synk): for extremely large H*W (> ~64K elems) the HW axis should
    # also be tiled with a two-pass IN-stat accumulation; not needed here.


def ibn_forward(x, gamma_in, beta_in, gamma_bn, beta_bn, *, eps=1e-5):
    """x: [N, C, H, W] (NCHW, like the PyTorch module)."""
    N, C, H, W = x.shape
    half = C // 2                     # int(planes / 2) in the PyTorch module
    c_bn = C - half
    HW = H * W
    itemsize = jnp.dtype(x.dtype).itemsize

    # Wrapper-side channel split + flatten spatial dims (free layout plumbing).
    x_in = x[:, :half, :, :].reshape(N, half, HW)
    x_bn = x[:, half:, :, :].reshape(N, c_bn, HW)

    g_in = gamma_in.reshape(1, half, 1)
    b_in = beta_in.reshape(1, half, 1)
    g_bn = gamma_bn.reshape(1, c_bn, 1)
    b_bn = beta_bn.reshape(1, c_bn, 1)

    cb_in = _channel_block(half, HW, itemsize)
    cb_bn = _channel_block(c_bn, HW, itemsize)
    n_cb_in = pl.cdiv(half, cb_in)
    n_cb_bn = pl.cdiv(c_bn, cb_bn)

    # ---- InstanceNorm half: fully parallel streaming grid -------------------
    out_in = pl.pallas_call(
        partial(_in_kernel, eps=eps),
        out_shape=jax.ShapeDtypeStruct((N, half, HW), x.dtype),
        grid=(N, n_cb_in),
        in_specs=[
            pl.BlockSpec((1, cb_in, HW), lambda n, c: (n, c, 0)),
            pl.BlockSpec((1, cb_in, 1), lambda n, c: (0, c, 0)),
            pl.BlockSpec((1, cb_in, 1), lambda n, c: (0, c, 0)),
        ],
        out_specs=pl.BlockSpec((1, cb_in, HW), lambda n, c: (n, c, 0)),
        compiler_params=pltpu.CompilerParams(
            dimension_semantics=("parallel", "parallel")),
    )(x_in, g_in, b_in)

    # ---- BatchNorm half, pass 1: per-channel stats (reduction over N) -------
    a_bn, bb_bn = pl.pallas_call(
        partial(_bn_stats_kernel, count=float(N * HW), eps=eps),
        out_shape=(jax.ShapeDtypeStruct((1, c_bn, 1), jnp.float32),
                   jax.ShapeDtypeStruct((1, c_bn, 1), jnp.float32)),
        grid=(n_cb_bn, N),
        in_specs=[
            pl.BlockSpec((1, cb_bn, HW), lambda c, n: (n, c, 0)),
            pl.BlockSpec((1, cb_bn, 1), lambda c, n: (0, c, 0)),
            pl.BlockSpec((1, cb_bn, 1), lambda c, n: (0, c, 0)),
        ],
        out_specs=(pl.BlockSpec((1, cb_bn, 1), lambda c, n: (0, c, 0)),
                   pl.BlockSpec((1, cb_bn, 1), lambda c, n: (0, c, 0))),
        scratch_shapes=[pltpu.VMEM((1, cb_bn, 1), jnp.float32),
                        pltpu.VMEM((1, cb_bn, 1), jnp.float32)],
        compiler_params=pltpu.CompilerParams(
            dimension_semantics=("parallel", "arbitrary")),
    )(x_bn, g_bn, b_bn)

    # ---- BatchNorm half, pass 2: streaming normalize (1R + 1W) --------------
    out_bn = pl.pallas_call(
        _bn_norm_kernel,
        out_shape=jax.ShapeDtypeStruct((N, c_bn, HW), x.dtype),
        grid=(N, n_cb_bn),
        in_specs=[
            pl.BlockSpec((1, cb_bn, HW), lambda n, c: (n, c, 0)),
            pl.BlockSpec((1, cb_bn, 1), lambda n, c: (0, c, 0)),
            pl.BlockSpec((1, cb_bn, 1), lambda n, c: (0, c, 0)),
        ],
        out_specs=pl.BlockSpec((1, cb_bn, HW), lambda n, c: (n, c, 0)),
        compiler_params=pltpu.CompilerParams(
            dimension_semantics=("parallel", "parallel")),
    )(x_bn, a_bn, bb_bn)

    out = jnp.concatenate([out_in, out_bn], axis=1)
    return out.reshape(N, C, H, W)


# ---------------------------------------------------------------------------
# Pure-JAX reference (matches PyTorch IBN.forward in training mode)
# ---------------------------------------------------------------------------
def ibn_reference(x, gamma_in, beta_in, gamma_bn, beta_bn, *, eps=1e-5):
    N, C, H, W = x.shape
    half = C // 2
    xin, xbn = x[:, :half], x[:, half:]

    mu = jnp.mean(xin, axis=(2, 3), keepdims=True)
    var = jnp.mean(jnp.square(xin - mu), axis=(2, 3), keepdims=True)
    out1 = (xin - mu) * jax.lax.rsqrt(var + eps)
    out1 = out1 * gamma_in[None, :, None, None] + beta_in[None, :, None, None]

    mu = jnp.mean(xbn, axis=(0, 2, 3), keepdims=True)
    var = jnp.mean(jnp.square(xbn - mu), axis=(0, 2, 3), keepdims=True)
    out2 = (xbn - mu) * jax.lax.rsqrt(var + eps)
    out2 = out2 * gamma_bn[None, :, None, None] + beta_bn[None, :, None, None]

    return jnp.concatenate([out1, out2], axis=1)


if __name__ == "__main__":
    # Small shapes consistent with the module: planes=4 -> half1=half2=2.
    N, C, H, W = 2, 4, 16, 16
    half1 = C // 2
    half2 = C - half1

    key = jax.random.PRNGKey(0)
    kx, kg1, kb1, kg2, kb2 = jax.random.split(key, 5)

    x = jax.random.normal(kx, (N, C, H, W), dtype=jnp.float32)
    gamma_in = 1.0 + 0.1 * jax.random.normal(kg1, (half1,), dtype=jnp.float32)
    beta_in = 0.1 * jax.random.normal(kb1, (half1,), dtype=jnp.float32)
    gamma_bn = 1.0 + 0.1 * jax.random.normal(kg2, (half2,), dtype=jnp.float32)
    beta_bn = 0.1 * jax.random.normal(kb2, (half2,), dtype=jnp.float32)

    out = ibn_forward(x, gamma_in, beta_in, gamma_bn, beta_bn)
    out = jax.block_until_ready(out)

    ref = ibn_reference(x, gamma_in, beta_in, gamma_bn, beta_bn)
    assert out.shape == (N, C, H, W)
    assert jnp.allclose(out, ref, atol=1e-4, rtol=1e-4), "mismatch vs reference"

    print("KERNEL_OK")
</pallas_src>

<mosaic_0001>
module attributes {stable_mosaic.version = 11 : i64} {
  func.func @_in_kernel(%arg0: i32, %arg1: i32, %arg2: memref<1x2x256xf32, #tpu.memory_space<vmem>>, %arg3: memref<1x2x1xf32, #tpu.memory_space<vmem>>, %arg4: memref<1x2x1xf32, #tpu.memory_space<vmem>>, %arg5: memref<1x2x256xf32, #tpu.memory_space<vmem>>) attributes {dimension_semantics = [#tpu.dimension_semantics<parallel>, #tpu.dimension_semantics<parallel>], iteration_bounds = array<i64: 2, 1>, scalar_prefetch = 0 : i64, scratch_operands = 0 : i64, tpu.core_type = #tpu.core_type<tc>, window_params = [{transform_indices = @transform_0, window_bounds = array<i64: 1, 2, 256>}, {transform_indices = @transform_1, window_bounds = array<i64: 1, 2, 1>}, {transform_indices = @transform_2, window_bounds = array<i64: 1, 2, 1>}, {transform_indices = @transform_3, window_bounds = array<i64: 1, 2, 256>}]} {
    %c0 = arith.constant 0 : index
    %c0_0 = arith.constant 0 : index
    %c0_1 = arith.constant 0 : index
    %0 = vector.load %arg2[%c0, %c0_0, %c0_1] : memref<1x2x256xf32, #tpu.memory_space<vmem>>, vector<1x2x256xf32>
    %cst = arith.constant dense<0.000000e+00> : vector<1x2xf32>
    %1 = vector.multi_reduction <add>, %0, %cst [2] : vector<1x2x256xf32> to vector<1x2xf32>
    %2 = vector.shape_cast %1 : vector<1x2xf32> to vector<1x2x1xf32>
    %cst_2 = arith.constant 3.906250e-03 : f32
    %3 = vector.broadcast %cst_2 : f32 to vector<1x2x1xf32>
    %4 = arith.mulf %2, %3 : vector<1x2x1xf32>
    %5 = arith.mulf %0, %0 : vector<1x2x256xf32>
    %cst_3 = arith.constant dense<0.000000e+00> : vector<1x2xf32>
    %6 = vector.multi_reduction <add>, %5, %cst_3 [2] : vector<1x2x256xf32> to vector<1x2xf32>
    %7 = vector.shape_cast %6 : vector<1x2xf32> to vector<1x2x1xf32>
    %cst_4 = arith.constant 3.906250e-03 : f32
    %8 = vector.broadcast %cst_4 : f32 to vector<1x2x1xf32>
    %9 = arith.mulf %7, %8 : vector<1x2x1xf32>
    %10 = arith.mulf %4, %4 : vector<1x2x1xf32>
    %11 = arith.subf %9, %10 : vector<1x2x1xf32>
    %cst_5 = arith.constant 0.000000e+00 : f32
    %12 = vector.broadcast %cst_5 : f32 to vector<1x2x1xf32>
    %13 = arith.maximumf %11, %12 : vector<1x2x1xf32>
    %cst_6 = arith.constant 9.99999974E-6 : f32
    %14 = vector.broadcast %cst_6 : f32 to vector<1x2x1xf32>
    %15 = arith.addf %13, %14 : vector<1x2x1xf32>
    %16 = math.rsqrt %15 : vector<1x2x1xf32>
    %c0_7 = arith.constant 0 : index
    %c0_8 = arith.constant 0 : index
    %c0_9 = arith.constant 0 : index
    %17 = vector.load %arg3[%c0_7, %c0_8, %c0_9] : memref<1x2x1xf32, #tpu.memory_space<vmem>>, vector<1x2x1xf32>
    %18 = arith.mulf %17, %16 : vector<1x2x1xf32>
    %c0_10 = arith.constant 0 : index
    %c0_11 = arith.constant 0 : index
    %c0_12 = arith.constant 0 : index
    %19 = vector.load %arg4[%c0_10, %c0_11, %c0_12] : memref<1x2x1xf32, #tpu.memory_space<vmem>>, vector<1x2x1xf32>
    %20 = arith.mulf %4, %18 : vector<1x2x1xf32>
    %21 = arith.subf %19, %20 : vector<1x2x1xf32>
    %22 = vector.broadcast %18 : vector<1x2x1xf32> to vector<1x2x256xf32>
    %23 = arith.mulf %0, %22 : vector<1x2x256xf32>
    %24 = vector.broadcast %21 : vector<1x2x1xf32> to vector<1x2x256xf32>
    %25 = arith.addf %23, %24 : vector<1x2x256xf32>
    %c0_13 = arith.constant 0 : index
    %c0_14 = arith.constant 0 : index
    %c0_15 = arith.constant 0 : index
    %26 = vector.load %arg5[%c0_13, %c0_14, %c0_15] : memref<1x2x256xf32, #tpu.memory_space<vmem>>, vector<1x2x256xf32>
    tpu.vector_store %arg5[%c0_13, %c0_14, %c0_15], %25 {strides = array<i32>} : memref<1x2x256xf32, #tpu.memory_space<vmem>>, vector<1x2x256xf32>,
    return
  }
  func.func @transform_0(%arg0: i32, %arg1: i32) -> (i32, i32, i32) {
    %c0_i32 = arith.constant 0 : i32
    %c0_i32_0 = arith.constant 0 : i32
    return %arg0, %arg1, %c0_i32 : i32, i32, i32
  }
  func.func @transform_1(%arg0: i32, %arg1: i32) -> (i32, i32, i32) {
    %c0_i32 = arith.constant 0 : i32
    %c0_i32_0 = arith.constant 0 : i32
    %c0_i32_1 = arith.constant 0 : i32
    return %c0_i32, %arg1, %c0_i32_0 : i32, i32, i32
  }
  func.func @transform_2(%arg0: i32, %arg1: i32) -> (i32, i32, i32) {
    %c0_i32 = arith.constant 0 : i32
    %c0_i32_0 = arith.constant 0 : i32
    %c0_i32_1 = arith.constant 0 : i32
    return %c0_i32, %arg1, %c0_i32_0 : i32, i32, i32
  }
  func.func @transform_3(%arg0: i32, %arg1: i32) -> (i32, i32, i32) {
    %c0_i32 = arith.constant 0 : i32
    %c0_i32_0 = arith.constant 0 : i32
    return %arg0, %arg1, %c0_i32 : i32, i32, i32
  }
}

</mosaic_0001>

<llo_original>
// kernel: tpu_custom_call.1
$region0: #{tpu_custom_call.1}
  #allocation0 [shape = 'u32[]', space=smem, size = 0x4, offset = 0x4, fixed_abs, tag = 'smem constant byte address 0x4 - core index']
  #allocation1 [shape = 'u32[144,128]{1,0:T(1,128)}', space=vmem, size = 0x12000, scoped, tag = 'internal scratch']
  %s0 = inlined_call_operand.hbm [shape: f32[2,2,256], index: 0, kind: input, shape index: {}]
  %s1 = inlined_call_operand.vmem [shape: f32[1,2,1], index: 1, kind: input, shape index: {}]
  %s2 = inlined_call_operand.vmem [shape: f32[1,2,1], index: 2, kind: input, shape index: {}]
  %s3 = inlined_call_operand.hbm [shape: f32[2,2,256], index: 3, kind: output, shape index: {}]
  %s4 = sld [smem:[#allocation0]]
  $region49: #{tpu_custom_call.1} parent=0
    _
  %s6 = ssub.s32 1, %s4
  %s7 = scalar_select 0, %s6, %s4
  $region1: #{tpu_custom_call.1} parent=0
    #allocation2 [shape = 'u8[4096]{0}', space=vmem, size = 0x1000, scoped, tag = 'input window, operand 0']
    #allocation3 [shape = 's32[2]{0}', space=sflag, size = 0x8, scoped, tag = 'scoped memory for tpu_custom_call.1']
    #allocation4 [shape = 's32[2]{0}', space=sflag, size = 0x8, scoped, tag = 'scoped memory for tpu_custom_call.1']
    #allocation5 [shape = 'u8[4096]{0}', space=vmem, size = 0x1000, scoped, tag = 'output window, operand 0']
    %8 = vsyncpa [#allocation3], 0
    %s9 = scalar_lea.sflag [#allocation3], 1
    %10 = vsyncpa %s9, 0
    %11 = vsyncpa [#allocation4], 0
    %s12 = scalar_lea.sflag [#allocation4], 1
    %13 = vsyncpa %s12, 0
    loop: start=0, step=1, limit=4
    $region2: #{tpu_custom_call.1} parent=1 // loop_pre_header
      _
    $region3: #{tpu_custom_call.1} parent=1 // loop_header
      %s15 = sphi 0, %s19
      %p16 = scmp.ge.s32.totalorder %s15, 4
      %s22 = sphi 0, %s34
      %s23 = sphi 0, %s30
      %s24 = sphi 0, %s22
      %s25 = sphi 0, %s23
      %s26 = sphi 0, %s24
      %s27 = sphi 0, %s25
      %s39 = sphi 0, %s41
      %s42 = sphi 0, %s39
      %s43 = sphi 0, %s42
      %s59 = sphi 0, %s43
      %s65 = sphi 0, %s67
      %s68 = sphi 0, %s65
      %s69 = sphi 0, %s68
      %s85 = sphi 0, %s69
      %s91 = sphi 0, %s93
      %s94 = sphi 0, %s91
      %s95 = sphi 0, %s94
      %s111 = sphi 0, %s95
      %s119 = sphi 0, %s121
      %s122 = sphi 0, %s119
      %s123 = sphi 0, %s122
      %s139 = sphi 0, %s123
    $region4: #{tpu_custom_call.1} parent=1 // loop_header_branch
      %18 = sbr.rel (%p16) target = $region8
    $region5: #{tpu_custom_call.1} parent=1 // loop_body
      %s20 = ssub.s32 %s15, 1
      %s21 = ssub.s32 %s15, 2
      %s28 = sadd.s32 1, %s23
      %p29 = scmp.ge.s32.totalorder %s28, 1
      %s30 = scalar_select %p29, 0, %s28
      %s31 = sadd.s32 1, %s22
      %s32 = scalar_select %p29, %s31, %s22
      %p33 = scmp.ge.s32.totalorder %s32, 2
      %s34 = scalar_select %p33, 0, %s32
      %s35 = ssub.s32 %s22, %s34
      %s36 = ssub.s32 %s23, %s30
      %s37 = sor.u32 %s35, %s36
      %p38 = scmp.eq.s32.totalorder %s37, 0
      %s40 = sadd.s32 %s39, 1
      %s41 = scalar_select %p38, %s39, %s40
      %p44 = pneg %p38
      %p45 = scmp.eq.s32.totalorder %s15, 1
      %p46 = por %p44, %p45
      %p47 = scmp.ne.s32.totalorder %s39, %s42
      %p48 = scmp.eq.s32.totalorder %s15, 0
      %p49 = por %p47, %p48
      %p50 = scmp.ne.s32.totalorder %s39, %s42
      %p51 = scmp.eq.s32.totalorder %s20, 1
      %p52 = por %p50, %p51
      %p53 = scmp.ne.s32.totalorder %s42, %s43
      %p54 = scmp.eq.s32.totalorder %s20, 0
      %p55 = por %p53, %p54
      %p56 = scmp.ne.s32.totalorder %s42, %s43
      %p57 = scmp.eq.s32.totalorder %s21, 1
      %p58 = por %p56, %p57
      %p60 = scmp.ne.s32.totalorder %s43, %s59
      %p61 = scmp.eq.s32.totalorder %s21, 0
      %p62 = por %p60, %p61
      %s63 = ssub.s32 %s23, %s30
      %p64 = scmp.eq.s32.totalorder %s63, 0
      %s66 = sadd.s32 %s65, 1
      %s67 = scalar_select %p64, %s65, %s66
      %p70 = pneg %p64
      %p71 = scmp.eq.s32.totalorder %s15, 1
      %p72 = por %p70, %p71
      %p73 = scmp.ne.s32.totalorder %s65, %s68
      %p74 = scmp.eq.s32.totalorder %s15, 0
      %p75 = por %p73, %p74
      %p76 = scmp.ne.s32.totalorder %s65, %s68
      %p77 = scmp.eq.s32.totalorder %s20, 1
      %p78 = por %p76, %p77
      %p79 = scmp.ne.s32.totalorder %s68, %s69
      %p80 = scmp.eq.s32.totalorder %s20, 0
      %p81 = por %p79, %p80
      %p82 = scmp.ne.s32.totalorder %s68, %s69
      %p83 = scmp.eq.s32.totalorder %s21, 1
      %p84 = por %p82, %p83
      %p86 = scmp.ne.s32.totalorder %s69, %s85
      %p87 = scmp.eq.s32.totalorder %s21, 0
      %p88 = por %p86, %p87
      %s89 = ssub.s32 %s23, %s30
      %p90 = scmp.eq.s32.totalorder %s89, 0
      %s92 = sadd.s32 %s91, 1
      %s93 = scalar_select %p90, %s91, %s92
      %p96 = pneg %p90
      %p97 = scmp.eq.s32.totalorder %s15, 1
      %p98 = por %p96, %p97
      %p99 = scmp.ne.s32.totalorder %s91, %s94
      %p100 = scmp.eq.s32.totalorder %s15, 0
      %p101 = por %p99, %p100
      %p102 = scmp.ne.s32.totalorder %s91, %s94
      %p103 = scmp.eq.s32.totalorder %s20, 1
      %p104 = por %p102, %p103
      %p105 = scmp.ne.s32.totalorder %s94, %s95
      %p106 = scmp.eq.s32.totalorder %s20, 0
      %p107 = por %p105, %p106
      %p108 = scmp.ne.s32.totalorder %s94, %s95
      %p109 = scmp.eq.s32.totalorder %s21, 1
      %p110 = por %p108, %p109
      %p112 = scmp.ne.s32.totalorder %s95, %s111
      %p113 = scmp.eq.s32.totalorder %s21, 0
      %p114 = por %p112, %p113
      %s115 = ssub.s32 %s22, %s34
      %s116 = ssub.s32 %s23, %s30
      %s117 = sor.u32 %s115, %s116
      %p118 = scmp.eq.s32.totalorder %s117, 0
      %s120 = sadd.s32 %s119, 1
      %s121 = scalar_select %p118, %s119, %s120
      %p124 = pneg %p118
      %p125 = scmp.eq.s32.totalorder %s15, 1
      %p126 = por %p124, %p125
      %p127 = scmp.ne.s32.totalorder %s119, %s122
      %p128 = scmp.eq.s32.totalorder %s15, 0
      %p129 = por %p127, %p128
      %p130 = scmp.ne.s32.totalorder %s119, %s122
      %p131 = scmp.eq.s32.totalorder %s20, 1
      %p132 = por %p130, %p131
      %p133 = scmp.ne.s32.totalorder %s122, %s123
      %p134 = scmp.eq.s32.totalorder %s20, 0
      %p135 = por %p133, %p134
      %p136 = scmp.ne.s32.totalorder %s122, %s123
      %p137 = scmp.eq.s32.totalorder %s21, 1
      %p138 = por %p136, %p137
      %p140 = scmp.ne.s32.totalorder %s123, %s139
      %p141 = scmp.eq.s32.totalorder %s21, 0
      %p142 = por %p140, %p141
      %p143 = scmp.le.s32.totalorder 1, %s15
      %p144 = scmp.lt.s32.totalorder %s15, 3
      %p145 = pnand %p143, %p144
      %p146 = pneg %p145
      // Predicated region
      $region9: #{tpu_custom_call.1} parent=5 // pred_check
        _
      $region10: #{tpu_custom_call.1} parent=5 // pred_check_branch
        %148 = sbr.rel (%p145) target = $region12
      $region11: #{tpu_custom_call.1} parent=5 // pred_region
        %s149 = ssub.s32 %s15, 1
        // Predicated region
        $region13: #{tpu_custom_call.1} parent=11 // pred_check
          %p150 = pneg %p81
        $region14: #{tpu_custom_call.1} parent=11 // pred_check_branch
          %152 = sbr.rel (%p150) target = $region16
        $region15: #{tpu_custom_call.1} parent=11 // pred_region
          %p153 = scmp.lt.s32.totalorder %s25, 0
          %s154 = scalar_select %p153, %s25, 0
          %s155 = smul.addr %s154, 2
          %s156 = scalar_lea.vmem %s1, %s155
        $region16: #{tpu_custom_call.1} parent=11 // pred_fallthru
          _
        // Predicated region
        $region17: #{tpu_custom_call.1} parent=11 // pred_check
          %p157 = pneg %p107
        $region18: #{tpu_custom_call.1} parent=11 // pred_check_branch
          %159 = sbr.rel (%p157) target = $region20
        $region19: #{tpu_custom_call.1} parent=11 // pred_region
          %p160 = scmp.lt.s32.totalorder %s25, 0
          %s161 = scalar_select %p160, %s25, 0
          %s162 = smul.addr %s161, 2
          %s163 = scalar_lea.vmem %s2, %s162
        $region20: #{tpu_custom_call.1} parent=11 // pred_fallthru
          _
      $region12: #{tpu_custom_call.1} parent=5 // pred_fallthru
        _
      %p164 = scmp.lt.s32.totalorder %s15, 2
      // Predicated region
      $region21: #{tpu_custom_call.1} parent=5 // pred_check
        %p165 = pneg %p164
      $region22: #{tpu_custom_call.1} parent=5 // pred_check_branch
        %167 = sbr.rel (%p165) target = $region24
      $region23: #{tpu_custom_call.1} parent=5 // pred_region
        // Predicated region
        $region25: #{tpu_custom_call.1} parent=23 // pred_check
          %p168 = pneg %p49
        $region26: #{tpu_custom_call.1} parent=23 // pred_check_branch
          %170 = sbr.rel (%p168) target = $region28
        $region27: #{tpu_custom_call.1} parent=23 // pred_region
          %s171 = sand.u32 %s39, 1
          %s172 = scalar_lea.sflag [#allocation3], %s171
          %s173 = sand.u32 %s39, 1
          %s174 = smul.addr %s173, 4
          %s175 = scalar_lea.vmem [#allocation2], %s174
          %s177 = ssub.s32 64, 64
          %178 = vsyncadd %s172, %s177
          %s179 = smul.addr %s23, 2
          %s180 = smul.addr %s22, 2
          %s181 = sadd.s32 %s179, %s180
          %s182 = smul.addr %s181, 32
          %s183 = scalar_lea.hbm %s0, %s182
          %s185 = sshll.u32 %s175, 4
          %s186 = int_to_ptr.vmem [resolvable:$true] %s185
          %188 = dma.hbm_to_vmem [thread:$0]  %s183, 64, %s186, %s172
        $region28: #{tpu_custom_call.1} parent=23 // pred_fallthru
          _
      $region24: #{tpu_custom_call.1} parent=5 // pred_fallthru
        _
      %p189 = scmp.le.s32.totalorder 1, %s15
      %p190 = scmp.lt.s32.totalorder %s15, 3
      %p191 = pnand %p189, %p190
      %p192 = pneg %p191
      // Predicated region
      $region29: #{tpu_custom_call.1} parent=5 // pred_check
        _
      $region30: #{tpu_custom_call.1} parent=5 // pred_check_branch
        %194 = sbr.rel (%p191) target = $region32
      $region31: #{tpu_custom_call.1} parent=5 // pred_region
        %s195 = ssub.s32 %s15, 1
        %s196 = sand.u32 %s42, 1
        %s197 = scalar_lea.sflag [#allocation3], %s196
        %s198 = sand.u32 %s42, 1
        %s199 = smul.addr %s198, 4
        %s200 = scalar_lea.vmem [#allocation2], %s199
        // Predicated region
        $region33: #{tpu_custom_call.1} parent=31 // pred_check
          %p201 = pneg %p55
        $region34: #{tpu_custom_call.1} parent=31 // pred_check_branch
          %203 = sbr.rel (%p201) target = $region36
        $region35: #{tpu_custom_call.1} parent=31 // pred_region
          %204 = dma.done %s197, 64
        $region36: #{tpu_custom_call.1} parent=31 // pred_fallthru
          _
        %s205 = sand.u32 %s42, 1
        %s206 = scalar_lea.sflag [#allocation3], %s205
        %s207 = sand.u32 %s42, 1
        %s208 = smul.addr %s207, 4
        %s209 = scalar_lea.vmem [#allocation2], %s208
        %p210 = pneg %p55
        %p211 = pneg %p52
        %p212 = scmp.lt.s32.totalorder %s25, 0
        %s213 = scalar_select %p212, %s25, 0
        %s214 = smul.addr %s213, 2
        %s215 = scalar_lea.vmem %s1, %s214
        %p216 = pneg %p81
        %p217 = pneg %p78
        %p218 = scmp.lt.s32.totalorder %s25, 0
        %s219 = scalar_select %p218, %s25, 0
        %s220 = smul.addr %s219, 2
        %s221 = scalar_lea.vmem %s2, %s220
        %p222 = pneg %p107
        %p223 = pneg %p104
        %p224 = pneg %p135
        %p225 = pneg %p132
        %s226 = sand.u32 %s122, 1
        %s227 = scalar_lea.sflag [#allocation4], %s226
        %s228 = sand.u32 %s122, 1
        %s229 = smul.addr %s228, 4
        %s230 = scalar_lea.vmem [#allocation5], %s229
        %p231 = scmp.lt.s32.totalorder %s25, 0
        %s232 = scalar_select %p231, %s25, 0
        %s233 = smul.addr %s232, 2
        %s234 = scalar_lea.vmem %s1, %s233
        %p235 = scmp.lt.s32.totalorder %s25, 0
        %s236 = scalar_select %p235, %s25, 0
        %s237 = smul.addr %s236, 2
        %s238 = scalar_lea.vmem %s2, %s237
        %v239 = vld [vmem:[%s200] sm:$0xf]
        %v242 = vunpack.c.l.s4 1983009808
        %v243 = vunpack.c.0.s8 %v242
        %v244 = vlaneseq
        %v245 = vshrl.u32 %v244, 7
        %v246 = vsub.s32 %v243, %v245
        %v247 = vrot.slane %v239, %v246
        %v248 = vcombine.high %v247, %v247
        %vm251 = vcmask 1041408
        %v252 = vsel %vm251, %v247, 0.0
        %v253 = vsel %vm251, %v248, 0.0
        %v254 = vadd.f32 %v252, %v253
        %255 = vadd.xlane.f32.xlu0 %v254
        %v256 = vpop.xlane.xlu0 %255
        %v257 = vmul.f32 %v256, 0.00390625
        %v258 = vmul.f32 %v239, %v239
        %v261 = vunpack.c.l.s4 1983009808
        %v262 = vunpack.c.0.s8 %v261
        %v263 = vlaneseq
        %v264 = vshrl.u32 %v263, 7
        %v265 = vsub.s32 %v262, %v264
        %v266 = vrot.slane %v258, %v265
        %v267 = vcombine.high %v266, %v266
        %v270 = vsel %vm251, %v266, 0.0
        %v271 = vsel %vm251, %v267, 0.0
        %v272 = vadd.f32 %v270, %v271
        %273 = vadd.xlane.f32.xlu0 %v272
        %v274 = vpop.xlane.xlu0 %273
        %v275 = vmul.f32 %v274, 0.00390625
        %v276 = vmul.f32 %v257, %v257
        %v277 = vsub.f32 %v275, %v276
        %v278 = vmax.f32 %v277, 0.0
        %v279 = vadd.f32 %v278, 1e-05
        %v280 = vrsqrt.pop %v279
        %v281 = vld [vmem:[%s234] sm:$0x3]
        %v282 = vmul.f32 %v281, %v280
        %v283 = vld [vmem:[%s238] sm:$0x3]
        %v284 = vmul.f32 %v257, %v282
        %v285 = vsub.f32 %v283, %v284
        %287 = vset.pattern.permute.xlu0 0
        %288 = vperm.xlu0 %287, %v282
        %v289 = vpop.permute.xlu0 %288
        %v291 = vunpack.c.l.s4 269488144
        %v292 = vunpack.c.0.s8 %v291
        %v293 = vlaneseq
        %v294 = vshrl.u32 %v293, 7
        %v295 = vsub.s32 %v292, %v294
        %v296 = vrot.slane %v289, %v295
        %v298 = vmul.f32 %v239, %v296
        %300 = vset.pattern.permute.xlu0 0
        %301 = vperm.xlu0 %300, %v285
        %v302 = vpop.permute.xlu0 %301
        %v304 = vunpack.c.l.s4 269488144
        %v305 = vunpack.c.0.s8 %v304
        %v306 = vlaneseq
        %v307 = vshrl.u32 %v306, 7
        %v308 = vsub.s32 %v305, %v307
        %v309 = vrot.slane %v302, %v308
        %v311 = vadd.f32 %v298, %v309
        %312 = vst [vmem:[%s230] sm:$0xf] %v311
        %s313 = sand.u32 %s122, 1
        %s314 = scalar_lea.sflag [#allocation4], %s313
        %s315 = sand.u32 %s122, 1
        %s316 = smul.addr %s315, 4
        %s317 = scalar_lea.vmem [#allocation5], %s316
        // Predicated region
        $region37: #{tpu_custom_call.1} parent=31 // pred_check
          %p318 = pneg %p132
        $region38: #{tpu_custom_call.1} parent=31 // pred_check_branch
          %320 = sbr.rel (%p318) target = $region40
        $region39: #{tpu_custom_call.1} parent=31 // pred_region
          %s322 = ssub.s32 64, 64
          %323 = vsyncadd %s314, %s322
          %s324 = smul.addr %s25, 2
          %s325 = smul.addr %s24, 2
          %s326 = sadd.s32 %s324, %s325
          %s327 = smul.addr %s326, 32
          %s328 = scalar_lea.hbm %s3, %s327
          %s330 = sshll.u32 %s317, 4
          %s331 = int_to_ptr.vmem [resolvable:$true] %s330
          %333 = dma.vmem_to_hbm [thread:$0]  %s331, 64, %s328, %s314
        $region40: #{tpu_custom_call.1} parent=31 // pred_fallthru
          _
      $region32: #{tpu_custom_call.1} parent=5 // pred_fallthru
        _
      %p334 = scmp.le.s32.totalorder 2, %s15
      // Predicated region
      $region41: #{tpu_custom_call.1} parent=5 // pred_check
        %p335 = pneg %p334
      $region42: #{tpu_custom_call.1} parent=5 // pred_check_branch
        %337 = sbr.rel (%p335) target = $region44
      $region43: #{tpu_custom_call.1} parent=5 // pred_region
        %s338 = ssub.s32 %s15, 2
        // Predicated region
        $region45: #{tpu_custom_call.1} parent=43 // pred_check
          %p339 = pneg %p138
        $region46: #{tpu_custom_call.1} parent=43 // pred_check_branch
          %341 = sbr.rel (%p339) target = $region48
        $region47: #{tpu_custom_call.1} parent=43 // pred_region
          %s342 = sand.u32 %s123, 1
          %s343 = scalar_lea.sflag [#allocation4], %s342
          %s344 = sand.u32 %s123, 1
          %s345 = smul.addr %s344, 4
          %s346 = scalar_lea.vmem [#allocation5], %s345
          %347 = dma.done %s343, 64
        $region48: #{tpu_custom_call.1} parent=43 // pred_fallthru
          _
      $region44: #{tpu_custom_call.1} parent=5 // pred_fallthru
        _
    $region6: #{tpu_custom_call.1} parent=1 // loop_footer
      %s19 = sadd.s32 1, %s15
    $region7: #{tpu_custom_call.1} parent=1 // loop_footer_branch
      %14 = sbr.rel target = $region3
    $region8: #{tpu_custom_call.1} parent=1 // loop_exit
      _
    %348 = vsyncpa [#allocation3], 1
    %s349 = scalar_lea.sflag [#allocation3], 1
    %350 = vsyncpa %s349, 1
    %351 = vsyncpa [#allocation4], 1
    %s352 = scalar_lea.sflag [#allocation4], 1
    %353 = vsyncpa %s352, 1

</llo_original>
